<compile_context>
chip_gen: v5e
topology: v5e:2x2
jax: 0.10.0
libtpu: 0.0.40
codegen_flags: <defaults>
</compile_context>

<pallas_src>
import jax
import jax.numpy as jnp
from jax.experimental import pallas as pl
from jax.experimental.pallas import tpu as pltpu

# Logical (unpadded) sizes mirroring train.py's NeuralNet (synthetic stand-ins).
INPUT_SIZE = 32    # len(all_words)
HIDDEN_SIZE = 16   # hidden_size in train.py
OUTPUT_SIZE = 8    # len(tags)

PAD = 128          # every feature dim padded to the 128-lane vreg/MXU width
TILE_B = 128       # batch rows per grid step
BATCH = 256        # rows per pallas_call (amortizes dispatch + DMA overhead)


def mlp_kernel(x_ref, w_ref, b_ref, o_ref):
    """Fused 3-layer MLP (fc1+ReLU -> fc2+ReLU -> fc3) on one batch tile.

    x_ref: (TILE_B, PAD)   zero-padded input rows
    w_ref: (PAD, 3*PAD)    packed [w1 | w2 | w3], each zero-padded to (PAD, PAD)
    b_ref: (1, 3*PAD)      packed [b1 | b2 | b3], zero-padded
    o_ref: (TILE_B, PAD)   lane-dense output (real columns = OUTPUT_SIZE)
    """
    x = x_ref[...]

    # fc1 + ReLU (padded weight columns / bias entries are zero -> padded
    # hidden lanes stay exactly 0 through the ReLU, so padding is inert).
    h1 = jnp.dot(x, w_ref[:, 0 * PAD:1 * PAD], preferred_element_type=jnp.float32)
    h1 = jnp.maximum(h1 + b_ref[:, 0 * PAD:1 * PAD], 0.0)

    # fc2 + ReLU
    h2 = jnp.dot(h1, w_ref[:, 1 * PAD:2 * PAD], preferred_element_type=jnp.float32)
    h2 = jnp.maximum(h2 + b_ref[:, 1 * PAD:2 * PAD], 0.0)

    # fc3 (no activation)
    out = jnp.dot(h2, w_ref[:, 2 * PAD:3 * PAD], preferred_element_type=jnp.float32)
    o_ref[...] = (out + b_ref[:, 2 * PAD:3 * PAD]).astype(o_ref.dtype)


def neural_net_forward(x, packed_params):
    """x: (B, INPUT_SIZE) f32 -> (B, OUTPUT_SIZE) f32."""
    w_slab, b_slab = packed_params
    B, F = x.shape
    assert F == INPUT_SIZE

    # Pad features to the lane width and the batch to a multiple of TILE_B.
    x_pad = jnp.pad(x, ((0, (-B) % TILE_B), (0, PAD - INPUT_SIZE)))
    Bp = x_pad.shape[0]

    out_pad = pl.pallas_call(
        mlp_kernel,
        out_shape=jax.ShapeDtypeStruct((Bp, PAD), jnp.float32),
        grid_spec=pltpu.PrefetchScalarGridSpec(
            num_scalar_prefetch=0,
            grid=(Bp // TILE_B,),
            in_specs=[
                # x: one batch tile per grid step
                pl.BlockSpec((TILE_B, PAD), lambda i: (i, 0)),
                # packed weights / biases: constant index -> fetched once,
                # stay VMEM-resident across all batch tiles
                pl.BlockSpec((PAD, 3 * PAD), lambda i: (0, 0)),
                pl.BlockSpec((1, 3 * PAD), lambda i: (0, 0)),
            ],
            out_specs=pl.BlockSpec((TILE_B, PAD), lambda i: (i, 0)),
        ),
        compiler_params=pltpu.CompilerParams(
            # batch tiles are independent -> megacore sharding on v7x,
            # harmless on v5e/v6e
            dimension_semantics=("parallel",),
        ),
    )(x_pad, w_slab, b_slab)

    # Drop batch padding and the padded output lanes.
    return out_pad[:B, :OUTPUT_SIZE]


def init_params(key):
    """Deterministic init mirroring nn.Linear shapes ((in, out) layout)."""
    ks = jax.random.split(key, 6)

    def linear(kw, kb, fan_in, fan_out):
        bound = 1.0 / jnp.sqrt(fan_in)
        w = jax.random.uniform(kw, (fan_in, fan_out), jnp.float32, -bound, bound)
        b = jax.random.uniform(kb, (1, fan_out), jnp.float32, -bound, bound)
        return w, b

    w1, b1 = linear(ks[0], ks[1], INPUT_SIZE, HIDDEN_SIZE)
    w2, b2 = linear(ks[2], ks[3], HIDDEN_SIZE, HIDDEN_SIZE)
    w3, b3 = linear(ks[4], ks[5], HIDDEN_SIZE, OUTPUT_SIZE)
    return w1, b1, w2, b2, w3, b3


def pack_params(params):
    """Zero-pad each layer to (PAD, PAD)/(1, PAD) and pack into two slabs."""
    w1, b1, w2, b2, w3, b3 = params

    def pad_w(w):
        fi, fo = w.shape
        return jnp.pad(w, ((0, PAD - fi), (0, PAD - fo)))

    def pad_b(b):
        return jnp.pad(b, ((0, 0), (0, PAD - b.shape[1])))

    w_slab = jnp.concatenate([pad_w(w1), pad_w(w2), pad_w(w3)], axis=1)  # (PAD, 3*PAD)
    b_slab = jnp.concatenate([pad_b(b1), pad_b(b2), pad_b(b3)], axis=1)  # (1, 3*PAD)
    return w_slab, b_slab


def reference_forward(x, params):
    w1, b1, w2, b2, w3, b3 = params
    h1 = jnp.maximum(x @ w1 + b1, 0.0)
    h2 = jnp.maximum(h1 @ w2 + b2, 0.0)
    return h2 @ w3 + b3


if __name__ == "__main__":
    key = jax.random.PRNGKey(0)
    k_x, k_p = jax.random.split(key)
    x = jax.random.normal(k_x, (BATCH, INPUT_SIZE), jnp.float32)
    params = init_params(k_p)
    packed = pack_params(params)

    out = neural_net_forward(x, packed)
    out = jax.block_until_ready(out)

    ref = reference_forward(x, params)
    assert out.shape == (BATCH, OUTPUT_SIZE)
    assert jnp.allclose(out, ref, atol=1e-4, rtol=1e-4), float(
        jnp.max(jnp.abs(out - ref))
    )
    print("KERNEL_OK")
</pallas_src>

<mosaic_0001>
module attributes {stable_mosaic.version = 11 : i64} {
  func.func @mlp_kernel(%arg0: i32, %arg1: memref<128x128xf32, #tpu.memory_space<vmem>>, %arg2: memref<128x384xf32, #tpu.memory_space<vmem>>, %arg3: memref<1x384xf32, #tpu.memory_space<vmem>>, %arg4: memref<128x128xf32, #tpu.memory_space<vmem>>) attributes {dimension_semantics = [#tpu.dimension_semantics<parallel>], iteration_bounds = array<i64: 2>, scalar_prefetch = 0 : i64, scratch_operands = 0 : i64, tpu.core_type = #tpu.core_type<tc>, window_params = [{transform_indices = @transform_0, window_bounds = array<i64: 128, 128>}, {pipeline_mode = #tpu.pipeline_mode<synchronous>, transform_indices = @transform_1, window_bounds = array<i64: 128, 384>}, {pipeline_mode = #tpu.pipeline_mode<synchronous>, transform_indices = @transform_2, window_bounds = array<i64: 1, 384>}, {transform_indices = @transform_3, window_bounds = array<i64: 128, 128>}]} {
    %c0 = arith.constant 0 : index
    %c0_0 = arith.constant 0 : index
    %0 = vector.load %arg1[%c0, %c0_0] : memref<128x128xf32, #tpu.memory_space<vmem>>, vector<128x128xf32>
    %c0_1 = arith.constant 0 : index
    %c0_2 = arith.constant 0 : index
    %1 = vector.load %arg2[%c0_1, %c0_2] : memref<128x384xf32, #tpu.memory_space<vmem>>, vector<128x128xf32>
    %cst = arith.constant dense<0.000000e+00> : vector<128x128xf32>
    %2 = tpu.matmul %0, %1, %cst {dimension_numbers = #tpu.dot_dimension_numbers<[1], [0], [0], [1], [0, 0, 1, 1], [], []>} : vector<128x128xf32>, vector<128x128xf32>, vector<128x128xf32> -> vector<128x128xf32>
    %c0_3 = arith.constant 0 : index
    %c0_4 = arith.constant 0 : index
    %3 = vector.load %arg3[%c0_3, %c0_4] : memref<1x384xf32, #tpu.memory_space<vmem>>, vector<1x128xf32>
    %4 = vector.broadcast %3 : vector<1x128xf32> to vector<128x128xf32>
    %5 = arith.addf %2, %4 : vector<128x128xf32>
    %cst_5 = arith.constant 0.000000e+00 : f32
    %6 = vector.broadcast %cst_5 : f32 to vector<128x128xf32>
    %7 = arith.maximumf %5, %6 : vector<128x128xf32>
    %c0_6 = arith.constant 0 : index
    %c128 = arith.constant 128 : index
    %8 = vector.load %arg2[%c0_6, %c128] : memref<128x384xf32, #tpu.memory_space<vmem>>, vector<128x128xf32>
    %cst_7 = arith.constant dense<0.000000e+00> : vector<128x128xf32>
    %9 = tpu.matmul %7, %8, %cst_7 {dimension_numbers = #tpu.dot_dimension_numbers<[1], [0], [0], [1], [0, 0, 1, 1], [], []>} : vector<128x128xf32>, vector<128x128xf32>, vector<128x128xf32> -> vector<128x128xf32>
    %c0_8 = arith.constant 0 : index
    %c128_9 = arith.constant 128 : index
    %10 = vector.load %arg3[%c0_8, %c128_9] : memref<1x384xf32, #tpu.memory_space<vmem>>, vector<1x128xf32>
    %11 = vector.broadcast %10 : vector<1x128xf32> to vector<128x128xf32>
    %12 = arith.addf %9, %11 : vector<128x128xf32>
    %cst_10 = arith.constant 0.000000e+00 : f32
    %13 = vector.broadcast %cst_10 : f32 to vector<128x128xf32>
    %14 = arith.maximumf %12, %13 : vector<128x128xf32>
    %c0_11 = arith.constant 0 : index
    %c256 = arith.constant 256 : index
    %15 = vector.load %arg2[%c0_11, %c256] : memref<128x384xf32, #tpu.memory_space<vmem>>, vector<128x128xf32>
    %cst_12 = arith.constant dense<0.000000e+00> : vector<128x128xf32>
    %16 = tpu.matmul %14, %15, %cst_12 {dimension_numbers = #tpu.dot_dimension_numbers<[1], [0], [0], [1], [0, 0, 1, 1], [], []>} : vector<128x128xf32>, vector<128x128xf32>, vector<128x128xf32> -> vector<128x128xf32>
    %c0_13 = arith.constant 0 : index
    %c256_14 = arith.constant 256 : index
    %17 = vector.load %arg3[%c0_13, %c256_14] : memref<1x384xf32, #tpu.memory_space<vmem>>, vector<1x128xf32>
    %18 = vector.broadcast %17 : vector<1x128xf32> to vector<128x128xf32>
    %19 = arith.addf %16, %18 : vector<128x128xf32>
    %c0_15 = arith.constant 0 : index
    %c0_16 = arith.constant 0 : index
    %20 = vector.load %arg4[%c0_15, %c0_16] : memref<128x128xf32, #tpu.memory_space<vmem>>, vector<128x128xf32>
    tpu.vector_store %arg4[%c0_15, %c0_16], %19 {strides = array<i32>} : memref<128x128xf32, #tpu.memory_space<vmem>>, vector<128x128xf32>,
    return
  }
  func.func @transform_0(%arg0: i32) -> (i32, i32) {
    %c0_i32 = arith.constant 0 : i32
    %c0_i32_0 = arith.constant 0 : i32
    return %arg0, %c0_i32 : i32, i32
  }
  func.func @transform_1(%arg0: i32) -> (i32, i32) {
    %c0_i32 = arith.constant 0 : i32
    %c0_i32_0 = arith.constant 0 : i32
    %c0_i32_1 = arith.constant 0 : i32
    return %c0_i32, %c0_i32_0 : i32, i32
  }
  func.func @transform_2(%arg0: i32) -> (i32, i32) {
    %c0_i32 = arith.constant 0 : i32
    %c0_i32_0 = arith.constant 0 : i32
    %c0_i32_1 = arith.constant 0 : i32
    return %c0_i32, %c0_i32_0 : i32, i32
  }
  func.func @transform_3(%arg0: i32) -> (i32, i32) {
    %c0_i32 = arith.constant 0 : i32
    %c0_i32_0 = arith.constant 0 : i32
    return %arg0, %c0_i32 : i32, i32
  }
}

</mosaic_0001>

<llo_original>
// kernel: tpu_custom_call.1
$region0: #{tpu_custom_call.1}
  #allocation0 [shape = 'u32[]', space=smem, size = 0x4, offset = 0x4, fixed_abs, tag = 'smem constant byte address 0x4 - core index']
  #allocation1 [shape = 'u32[72,128]{1,0:T(1,128)}', space=vmem, size = 0x9000, scoped, tag = 'internal scratch']
  %s0 = inlined_call_operand.hbm [shape: f32[256,128], index: 0, kind: input, shape index: {}]
  %s1 = inlined_call_operand.hbm [shape: f32[128,384], index: 1, kind: input, shape index: {}]
  %s2 = inlined_call_operand.hbm [shape: f32[1,384], index: 2, kind: input, shape index: {}]
  %s3 = inlined_call_operand.hbm [shape: f32[256,128], index: 3, kind: output, shape index: {}]
  %s4 = sld [smem:[#allocation0]]
  $region57: #{tpu_custom_call.1} parent=0
    _
  %s6 = ssub.s32 1, %s4
  %s7 = scalar_select 0, %s6, %s4
  $region1: #{tpu_custom_call.1} parent=0
    #allocation2 [shape = 'u8[131072]{0}', space=vmem, size = 0x20000, scoped, tag = 'input window, operand 0']
    #allocation3 [shape = 's32[2]{0}', space=sflag, size = 0x8, scoped, tag = 'scoped memory for tpu_custom_call.1']
    #allocation4 [shape = 's32[2]{0}', space=sflag, size = 0x8, scoped, tag = 'scoped memory for tpu_custom_call.1']
    #allocation5 [shape = 'u8[196608]{0}', space=vmem, size = 0x30000, scoped, tag = 'input window, operand 1, single buffered']
    #allocation6 [shape = 's32[1]{0}', space=sflag, size = 0x4, scoped, tag = 'scoped memory for tpu_custom_call.1']
    #allocation7 [shape = 'u8[1536]{0}', space=vmem, size = 0x800, scoped, tag = 'input window, operand 2, single buffered']
    #allocation8 [shape = 'u8[131072]{0}', space=vmem, size = 0x20000, scoped, tag = 'output window, operand 0']
    %8 = vsyncpa [#allocation3], 0
    %s9 = scalar_lea.sflag [#allocation3], 1
    %10 = vsyncpa %s9, 0
    %11 = vsyncpa [#allocation6], 0
    %12 = vsyncpa [#allocation4], 0
    %s13 = scalar_lea.sflag [#allocation4], 1
    %14 = vsyncpa %s13, 0
    loop: start=0, step=1, limit=4
    $region2: #{tpu_custom_call.1} parent=1 // loop_pre_header
      _
    $region3: #{tpu_custom_call.1} parent=1 // loop_header
      %s16 = sphi 0, %s20
      %p17 = scmp.ge.s32.totalorder %s16, 4
      %s26 = sphi 0, %s28
      %s29 = sphi 0, %s26
      %s30 = sphi 0, %s29
      %s46 = sphi 0, %s30
      %s50 = sphi 0, %s50
      %s52 = sphi 0, %s50
      %s53 = sphi 0, %s52
      %s67 = sphi 0, %s53
      %s71 = sphi 0, %s71
      %s73 = sphi 0, %s71
      %s74 = sphi 0, %s73
      %s88 = sphi 0, %s74
      %s94 = sphi 0, %s96
      %s97 = sphi 0, %s94
      %s98 = sphi 0, %s97
      %s114 = sphi 0, %s98
    $region4: #{tpu_custom_call.1} parent=1 // loop_header_branch
      %19 = sbr.rel (%p17) target = $region8
    $region5: #{tpu_custom_call.1} parent=1 // loop_body
      %s21 = ssub.s32 %s16, 1
      %s22 = ssub.s32 %s16, 2
      %s23 = sadd.s32 %s16, 1
      %s24 = ssub.s32 %s16, %s23
      %p25 = scmp.eq.s32.totalorder %s24, 0
      %s27 = sadd.s32 %s26, 1
      %s28 = scalar_select %p25, %s26, %s27
      %p31 = pneg %p25
      %p32 = scmp.eq.s32.totalorder %s16, 1
      %p33 = por %p31, %p32
      %p34 = scmp.ne.s32.totalorder %s26, %s29
      %p35 = scmp.eq.s32.totalorder %s16, 0
      %p36 = por %p34, %p35
      %p37 = scmp.ne.s32.totalorder %s26, %s29
      %p38 = scmp.eq.s32.totalorder %s21, 1
      %p39 = por %p37, %p38
      %p40 = scmp.ne.s32.totalorder %s29, %s30
      %p41 = scmp.eq.s32.totalorder %s21, 0
      %p42 = por %p40, %p41
      %p43 = scmp.ne.s32.totalorder %s29, %s30
      %p44 = scmp.eq.s32.totalorder %s22, 1
      %p45 = por %p43, %p44
      %p47 = scmp.ne.s32.totalorder %s30, %s46
      %p48 = scmp.eq.s32.totalorder %s22, 0
      %p49 = por %p47, %p48
      %s51 = sadd.s32 %s50, 1
      %p54 = scmp.eq.s32.totalorder %s16, 1
      %p55 = scmp.ne.s32.totalorder %s50, %s52
      %p56 = scmp.eq.s32.totalorder %s16, 0
      %p57 = por %p55, %p56
      %p58 = scmp.ne.s32.totalorder %s50, %s52
      %p59 = scmp.eq.s32.totalorder %s21, 1
      %p60 = por %p58, %p59
      %p61 = scmp.ne.s32.totalorder %s52, %s53
      %p62 = scmp.eq.s32.totalorder %s21, 0
      %p63 = por %p61, %p62
      %p64 = scmp.ne.s32.totalorder %s52, %s53
      %p65 = scmp.eq.s32.totalorder %s22, 1
      %p66 = por %p64, %p65
      %p68 = scmp.ne.s32.totalorder %s53, %s67
      %p69 = scmp.eq.s32.totalorder %s22, 0
      %p70 = por %p68, %p69
      %s72 = sadd.s32 %s71, 1
      %p75 = scmp.eq.s32.totalorder %s16, 1
      %p76 = scmp.ne.s32.totalorder %s71, %s73
      %p77 = scmp.eq.s32.totalorder %s16, 0
      %p78 = por %p76, %p77
      %p79 = scmp.ne.s32.totalorder %s71, %s73
      %p80 = scmp.eq.s32.totalorder %s21, 1
      %p81 = por %p79, %p80
      %p82 = scmp.ne.s32.totalorder %s73, %s74
      %p83 = scmp.eq.s32.totalorder %s21, 0
      %p84 = por %p82, %p83
      %p85 = scmp.ne.s32.totalorder %s73, %s74
      %p86 = scmp.eq.s32.totalorder %s22, 1
      %p87 = por %p85, %p86
      %p89 = scmp.ne.s32.totalorder %s74, %s88
      %p90 = scmp.eq.s32.totalorder %s22, 0
      %p91 = por %p89, %p90
      %s92 = ssub.s32 %s16, %s23
      %p93 = scmp.eq.s32.totalorder %s92, 0
      %s95 = sadd.s32 %s94, 1
      %s96 = scalar_select %p93, %s94, %s95
      %p99 = pneg %p93
      %p100 = scmp.eq.s32.totalorder %s16, 1
      %p101 = por %p99, %p100
      %p102 = scmp.ne.s32.totalorder %s94, %s97
      %p103 = scmp.eq.s32.totalorder %s16, 0
      %p104 = por %p102, %p103
      %p105 = scmp.ne.s32.totalorder %s94, %s97
      %p106 = scmp.eq.s32.totalorder %s21, 1
      %p107 = por %p105, %p106
      %p108 = scmp.ne.s32.totalorder %s97, %s98
      %p109 = scmp.eq.s32.totalorder %s21, 0
      %p110 = por %p108, %p109
      %p111 = scmp.ne.s32.totalorder %s97, %s98
      %p112 = scmp.eq.s32.totalorder %s22, 1
      %p113 = por %p111, %p112
      %p115 = scmp.ne.s32.totalorder %s98, %s114
      %p116 = scmp.eq.s32.totalorder %s22, 0
      %p117 = por %p115, %p116
      %p118 = scmp.le.s32.totalorder 1, %s16
      %p119 = scmp.lt.s32.totalorder %s16, 3
      %p120 = pnand %p118, %p119
      %p121 = pneg %p120
      // Predicated region
      $region9: #{tpu_custom_call.1} parent=5 // pred_check
        _
      $region10: #{tpu_custom_call.1} parent=5 // pred_check_branch
        %123 = sbr.rel (%p120) target = $region12
      $region11: #{tpu_custom_call.1} parent=5 // pred_region
        %s124 = ssub.s32 %s16, 1
        // Predicated region
        $region13: #{tpu_custom_call.1} parent=11 // pred_check
          %p125 = pneg %p63
        $region14: #{tpu_custom_call.1} parent=11 // pred_check_branch
          %127 = sbr.rel (%p125) target = $region16
        $region15: #{tpu_custom_call.1} parent=11 // pred_region
          %129 = vsyncadd [#allocation6], 0
          %s130 = sshll.u32 %s1, 4
          %s131 = int_to_ptr.hbm [resolvable:$true] %s130
          %s132 = sshll.u32 [#allocation5], 4
          %s133 = int_to_ptr.vmem [resolvable:$true] %s132
          %138 = dma.hbm_to_vmem [thread:$0]  %s131, 6144, %s133, [#allocation6], 384, 384, 24
        $region16: #{tpu_custom_call.1} parent=11 // pred_fallthru
          _
        // Predicated region
        $region17: #{tpu_custom_call.1} parent=11 // pred_check
          %p139 = pneg %p84
        $region18: #{tpu_custom_call.1} parent=11 // pred_check_branch
          %141 = sbr.rel (%p139) target = $region20
        $region19: #{tpu_custom_call.1} parent=11 // pred_region
          %143 = vsyncadd [#allocation6], 0
          %s145 = sshll.u32 %s2, 4
          %s146 = int_to_ptr.hbm [resolvable:$true] %s145
          %s147 = sshll.u32 [#allocation7], 4
          %s148 = int_to_ptr.vmem [resolvable:$true] %s147
          %150 = dma.hbm_to_vmem [thread:$0]  %s146, 48, %s148, [#allocation6]
        $region20: #{tpu_custom_call.1} parent=11 // pred_fallthru
          _
      $region12: #{tpu_custom_call.1} parent=5 // pred_fallthru
        _
      %p151 = scmp.lt.s32.totalorder %s16, 2
      // Predicated region
      $region21: #{tpu_custom_call.1} parent=5 // pred_check
        %p152 = pneg %p151
      $region22: #{tpu_custom_call.1} parent=5 // pred_check_branch
        %154 = sbr.rel (%p152) target = $region24
      $region23: #{tpu_custom_call.1} parent=5 // pred_region
        // Predicated region
        $region25: #{tpu_custom_call.1} parent=23 // pred_check
          %p155 = pneg %p36
        $region26: #{tpu_custom_call.1} parent=23 // pred_check_branch
          %157 = sbr.rel (%p155) target = $region28
        $region27: #{tpu_custom_call.1} parent=23 // pred_region
          %s158 = sand.u32 %s26, 1
          %s159 = scalar_lea.sflag [#allocation3], %s158
          %s160 = sand.u32 %s26, 1
          %s161 = smul.addr %s160, 128
          %s162 = scalar_lea.vmem [#allocation2], %s161
          %s163 = smul.u32 16, %s16
          %165 = vsyncadd %s159, 0
          %s166 = smul.addr %s163, 8
          %s167 = scalar_lea.hbm %s0, %s166
          %s168 = sshll.u32 %s167, 4
          %s169 = int_to_ptr.hbm [resolvable:$true] %s168
          %s170 = sshll.u32 %s162, 4
          %s171 = int_to_ptr.vmem [resolvable:$true] %s170
          %176 = dma.hbm_to_vmem [thread:$0]  %s169, 2048, %s171, %s159, 128, 128, 8
        $region28: #{tpu_custom_call.1} parent=23 // pred_fallthru
          _
      $region24: #{tpu_custom_call.1} parent=5 // pred_fallthru
        _
      %p177 = scmp.le.s32.totalorder 1, %s16
      %p178 = scmp.lt.s32.totalorder %s16, 3
      %p179 = pnand %p177, %p178
      %p180 = pneg %p179
      // Predicated region
      $region29: #{tpu_custom_call.1} parent=5 // pred_check
        _
      $region30: #{tpu_custom_call.1} parent=5 // pred_check_branch
        %182 = sbr.rel (%p179) target = $region32
      $region31: #{tpu_custom_call.1} parent=5 // pred_region
        %s183 = ssub.s32 %s16, 1
        %s184 = sand.u32 %s29, 1
        %s185 = scalar_lea.sflag [#allocation3], %s184
        %s186 = sand.u32 %s29, 1
        %s187 = smul.addr %s186, 128
        %s188 = scalar_lea.vmem [#allocation2], %s187
        // Predicated region
        $region33: #{tpu_custom_call.1} parent=31 // pred_check
          %p189 = pneg %p42
        $region34: #{tpu_custom_call.1} parent=31 // pred_check_branch
          %191 = sbr.rel (%p189) target = $region36
        $region35: #{tpu_custom_call.1} parent=31 // pred_region
          %193 = dma.done %s185, 2048
        $region36: #{tpu_custom_call.1} parent=31 // pred_fallthru
          _
        // Predicated region
        $region37: #{tpu_custom_call.1} parent=31 // pred_check
          %p194 = pneg %p63
        $region38: #{tpu_custom_call.1} parent=31 // pred_check_branch
          %196 = sbr.rel (%p194) target = $region40
        $region39: #{tpu_custom_call.1} parent=31 // pred_region
          %198 = dma.done [#allocation6], 6144
        $region40: #{tpu_custom_call.1} parent=31 // pred_fallthru
          _
        // Predicated region
        $region41: #{tpu_custom_call.1} parent=31 // pred_check
          %p199 = pneg %p84
        $region42: #{tpu_custom_call.1} parent=31 // pred_check_branch
          %201 = sbr.rel (%p199) target = $region44
        $region43: #{tpu_custom_call.1} parent=31 // pred_region
          %203 = dma.done [#allocation6], 48
        $region44: #{tpu_custom_call.1} parent=31 // pred_fallthru
          _
        %s204 = sand.u32 %s29, 1
        %s205 = scalar_lea.sflag [#allocation3], %s204
        %s206 = sand.u32 %s29, 1
        %s207 = smul.addr %s206, 128
        %s208 = scalar_lea.vmem [#allocation2], %s207
        %p209 = pneg %p42
        %p210 = pneg %p39
        %p211 = pneg %p63
        %p212 = pneg %p60
        %p213 = pneg %p84
        %p214 = pneg %p81
        %p215 = pneg %p110
        %p216 = pneg %p107
        %s217 = sand.u32 %s97, 1
        %s218 = scalar_lea.sflag [#allocation4], %s217
        %s219 = sand.u32 %s97, 1
        %s220 = smul.addr %s219, 128
        %s221 = scalar_lea.vmem [#allocation8], %s220
        %s222 = smul.u32 16, %s21
        %s223 = smul.u32 16, %s21
        %v224 = vld [vmem:[%s188] sm:$0xff]
        %v225 = vld [vmem:[%s188 + $0x8] sm:$0xff]
        %v226 = vld [vmem:[%s188 + $0x10] sm:$0xff]
        %v227 = vld [vmem:[%s188 + $0x18] sm:$0xff]
        %v228 = vld [vmem:[%s188 + $0x20] sm:$0xff]
        %v229 = vld [vmem:[%s188 + $0x28] sm:$0xff]
        %v230 = vld [vmem:[%s188 + $0x30] sm:$0xff]
        %v231 = vld [vmem:[%s188 + $0x38] sm:$0xff]
        %v232 = vld [vmem:[%s188 + $0x40] sm:$0xff]
        %v233 = vld [vmem:[%s188 + $0x48] sm:$0xff]
        %v234 = vld [vmem:[%s188 + $0x50] sm:$0xff]
        %v235 = vld [vmem:[%s188 + $0x58] sm:$0xff]
        %v236 = vld [vmem:[%s188 + $0x60] sm:$0xff]
        %v237 = vld [vmem:[%s188 + $0x68] sm:$0xff]
        %v238 = vld [vmem:[%s188 + $0x70] sm:$0xff]
        %v239 = vld [vmem:[%s188 + $0x78] sm:$0xff]
        %v240 = vld [vmem:[#allocation5] sm:$0xff]
        %v241 = vld [vmem:[#allocation5 + $0x18] sm:$0xff]
        %v242 = vld [vmem:[#allocation5 + $0x30] sm:$0xff]
        %v243 = vld [vmem:[#allocation5 + $0x48] sm:$0xff]
        %v244 = vld [vmem:[#allocation5 + $0x60] sm:$0xff]
        %v245 = vld [vmem:[#allocation5 + $0x78] sm:$0xff]
        %v246 = vld [vmem:[#allocation5 + $0x90] sm:$0xff]
        %v247 = vld [vmem:[#allocation5 + $0xa8] sm:$0xff]
        %v248 = vld [vmem:[#allocation5 + $0xc0] sm:$0xff]
        %v249 = vld [vmem:[#allocation5 + $0xd8] sm:$0xff]
        %v250 = vld [vmem:[#allocation5 + $0xf0] sm:$0xff]
        %v251 = vld [vmem:[#allocation5 + $0x108] sm:$0xff]
        %v252 = vld [vmem:[#allocation5 + $0x120] sm:$0xff]
        %v253 = vld [vmem:[#allocation5 + $0x138] sm:$0xff]
        %v254 = vld [vmem:[#allocation5 + $0x150] sm:$0xff]
        %v255 = vld [vmem:[#allocation5 + $0x168] sm:$0xff]
        %v256 = vld [vmem:[#allocation7] sm:$0x1]
        %v258 = vperm.slane %v256, 0
        %260 = vmatpush.msra.mxu0 %v255
        %261 = vmatpush.msra.mxu0 %v254
        %262 = vmatpush.msra.mxu0 %v253
        %263 = vmatpush.msra.mxu0 %v252
        %264 = vmatpush.msra.mxu0 %v251
        %265 = vmatpush.msra.mxu0 %v250
        %266 = vmatpush.msra.mxu0 %v249
        %267 = vmatpush.msra.mxu0 %v248
        %268 = vmatpush.msra.mxu0 %v247
        %269 = vmatpush.msra.mxu0 %v246
        %270 = vmatpush.msra.mxu0 %v245
        %271 = vmatpush.msra.mxu0 %v244
        %272 = vmatpush.msra.mxu0 %v243
        %273 = vmatpush.msra.mxu0 %v242
        %274 = vmatpush.msra.mxu0 %v241
        %275 = vmatpush.msra.mxu0 %v240
        %276 = vmatmul.f32.gmra.mxu0 %v224
        %v277 = vpop.f32.mrf.mxu0
        %v278 = vadd.f32 %v258, %v277
        %279 = vmatmul.f32.gmra.mxu0 %v225
        %v280 = vpop.f32.mrf.mxu0
        %v281 = vadd.f32 %v258, %v280
        %282 = vmatmul.f32.gmra.mxu0 %v226
        %v283 = vpop.f32.mrf.mxu0
        %v284 = vadd.f32 %v258, %v283
        %285 = vmatmul.f32.gmra.mxu0 %v227
        %v286 = vpop.f32.mrf.mxu0
        %v287 = vadd.f32 %v258, %v286
        %288 = vmatmul.f32.gmra.mxu0 %v228
        %v289 = vpop.f32.mrf.mxu0
        %v290 = vadd.f32 %v258, %v289
        %291 = vmatmul.f32.gmra.mxu0 %v229
        %v292 = vpop.f32.mrf.mxu0
        %v293 = vadd.f32 %v258, %v292
        %294 = vmatmul.f32.gmra.mxu0 %v230
        %v295 = vpop.f32.mrf.mxu0
        %v296 = vadd.f32 %v258, %v295
        %297 = vmatmul.f32.gmra.mxu0 %v231
        %v298 = vpop.f32.mrf.mxu0
        %v299 = vadd.f32 %v258, %v298
        %300 = vmatmul.f32.gmra.mxu0 %v232
        %v301 = vpop.f32.mrf.mxu0
        %v302 = vadd.f32 %v258, %v301
        %303 = vmatmul.f32.gmra.mxu0 %v233
        %v304 = vpop.f32.mrf.mxu0
        %v305 = vadd.f32 %v258, %v304
        %306 = vmatmul.f32.gmra.mxu0 %v234
        %v307 = vpop.f32.mrf.mxu0
        %v308 = vadd.f32 %v258, %v307
        %309 = vmatmul.f32.gmra.mxu0 %v235
        %v310 = vpop.f32.mrf.mxu0
        %v311 = vadd.f32 %v258, %v310
        %312 = vmatmul.f32.gmra.mxu0 %v236
        %v313 = vpop.f32.mrf.mxu0
        %v314 = vadd.f32 %v258, %v313
        %315 = vmatmul.f32.gmra.mxu0 %v237
        %v316 = vpop.f32.mrf.mxu0
        %v317 = vadd.f32 %v258, %v316
        %318 = vmatmul.f32.gmra.mxu0 %v238
        %v319 = vpop.f32.mrf.mxu0
        %v320 = vadd.f32 %v258, %v319
        %321 = vmatmul.f32.gmra.mxu0 %v239
        %v322 = vpop.f32.mrf.mxu0
        %v323 = vadd.f32 %v258, %v322
        %324 = vdwg.mxu0
        %v325 = vmax.f32 %v278, 0.0
        %v326 = vmax.f32 %v281, 0.0
        %v327 = vmax.f32 %v284, 0.0
        %v328 = vmax.f32 %v287, 0.0
        %v329 = vmax.f32 %v290, 0.0
        %v330 = vmax.f32 %v293, 0.0
        %v331 = vmax.f32 %v296, 0.0
        %v332 = vmax.f32 %v299, 0.0
        %v333 = vmax.f32 %v302, 0.0
        %v334 = vmax.f32 %v305, 0.0
        %v335 = vmax.f32 %v308, 0.0
        %v336 = vmax.f32 %v311, 0.0
        %v337 = vmax.f32 %v314, 0.0
        %v338 = vmax.f32 %v317, 0.0
        %v339 = vmax.f32 %v320, 0.0
        %v340 = vmax.f32 %v323, 0.0
        %v341 = vld [vmem:[#allocation5 + $0x8] sm:$0xff]
        %v342 = vld [vmem:[#allocation5 + $0x20] sm:$0xff]
        %v343 = vld [vmem:[#allocation5 + $0x38] sm:$0xff]
        %v344 = vld [vmem:[#allocation5 + $0x50] sm:$0xff]
        %v345 = vld [vmem:[#allocation5 + $0x68] sm:$0xff]
        %v346 = vld [vmem:[#allocation5 + $0x80] sm:$0xff]
        %v347 = vld [vmem:[#allocation5 + $0x98] sm:$0xff]
        %v348 = vld [vmem:[#allocation5 + $0xb0] sm:$0xff]
        %v349 = vld [vmem:[#allocation5 + $0xc8] sm:$0xff]
        %v350 = vld [vmem:[#allocation5 + $0xe0] sm:$0xff]
        %v351 = vld [vmem:[#allocation5 + $0xf8] sm:$0xff]
        %v352 = vld [vmem:[#allocation5 + $0x110] sm:$0xff]
        %v353 = vld [vmem:[#allocation5 + $0x128] sm:$0xff]
        %v354 = vld [vmem:[#allocation5 + $0x140] sm:$0xff]
        %v355 = vld [vmem:[#allocation5 + $0x158] sm:$0xff]
        %v356 = vld [vmem:[#allocation5 + $0x170] sm:$0xff]
        %v357 = vld [vmem:[#allocation7 + $0x1] sm:$0x1]
        %v359 = vperm.slane %v357, 0
        %361 = vmatpush.msra.mxu0 %v356
        %362 = vmatpush.msra.mxu0 %v355
        %363 = vmatpush.msra.mxu0 %v354
        %364 = vmatpush.msra.mxu0 %v353
        %365 = vmatpush.msra.mxu0 %v352
        %366 = vmatpush.msra.mxu0 %v351
        %367 = vmatpush.msra.mxu0 %v350
        %368 = vmatpush.msra.mxu0 %v349
        %369 = vmatpush.msra.mxu0 %v348
        %370 = vmatpush.msra.mxu0 %v347
        %371 = vmatpush.msra.mxu0 %v346
        %372 = vmatpush.msra.mxu0 %v345
        %373 = vmatpush.msra.mxu0 %v344
        %374 = vmatpush.msra.mxu0 %v343
        %375 = vmatpush.msra.mxu0 %v342
        %376 = vmatpush.msra.mxu0 %v341
        %377 = vmatmul.f32.gmra.mxu0 %v325
        %v378 = vpop.f32.mrf.mxu0
        %v379 = vadd.f32 %v359, %v378
        %380 = vmatmul.f32.gmra.mxu0 %v326
        %v381 = vpop.f32.mrf.mxu0
        %v382 = vadd.f32 %v359, %v381
        %383 = vmatmul.f32.gmra.mxu0 %v327
        %v384 = vpop.f32.mrf.mxu0
        %v385 = vadd.f32 %v359, %v384
        %386 = vmatmul.f32.gmra.mxu0 %v328
        %v387 = vpop.f32.mrf.mxu0
        %v388 = vadd.f32 %v359, %v387
        %389 = vmatmul.f32.gmra.mxu0 %v329
        %v390 = vpop.f32.mrf.mxu0
        %v391 = vadd.f32 %v359, %v390
        %392 = vmatmul.f32.gmra.mxu0 %v330
        %v393 = vpop.f32.mrf.mxu0
        %v394 = vadd.f32 %v359, %v393
        %395 = vmatmul.f32.gmra.mxu0 %v331
        %v396 = vpop.f32.mrf.mxu0
        %v397 = vadd.f32 %v359, %v396
        %398 = vmatmul.f32.gmra.mxu0 %v332
        %v399 = vpop.f32.mrf.mxu0
        %v400 = vadd.f32 %v359, %v399
        %401 = vmatmul.f32.gmra.mxu0 %v333
        %v402 = vpop.f32.mrf.mxu0
        %v403 = vadd.f32 %v359, %v402
        %404 = vmatmul.f32.gmra.mxu0 %v334
        %v405 = vpop.f32.mrf.mxu0
        %v406 = vadd.f32 %v359, %v405
        %407 = vmatmul.f32.gmra.mxu0 %v335
        %v408 = vpop.f32.mrf.mxu0
        %v409 = vadd.f32 %v359, %v408
        %410 = vmatmul.f32.gmra.mxu0 %v336
        %v411 = vpop.f32.mrf.mxu0
        %v412 = vadd.f32 %v359, %v411
        %413 = vmatmul.f32.gmra.mxu0 %v337
        %v414 = vpop.f32.mrf.mxu0
        %v415 = vadd.f32 %v359, %v414
        %416 = vmatmul.f32.gmra.mxu0 %v338
        %v417 = vpop.f32.mrf.mxu0
        %v418 = vadd.f32 %v359, %v417
        %419 = vmatmul.f32.gmra.mxu0 %v339
        %v420 = vpop.f32.mrf.mxu0
        %v421 = vadd.f32 %v359, %v420
        %422 = vmatmul.f32.gmra.mxu0 %v340
        %v423 = vpop.f32.mrf.mxu0
        %v424 = vadd.f32 %v359, %v423
        %425 = vdwg.mxu0
        %v426 = vmax.f32 %v379, 0.0
        %v427 = vmax.f32 %v382, 0.0
        %v428 = vmax.f32 %v385, 0.0
        %v429 = vmax.f32 %v388, 0.0
        %v430 = vmax.f32 %v391, 0.0
        %v431 = vmax.f32 %v394, 0.0
        %v432 = vmax.f32 %v397, 0.0
        %v433 = vmax.f32 %v400, 0.0
        %v434 = vmax.f32 %v403, 0.0
        %v435 = vmax.f32 %v406, 0.0
        %v436 = vmax.f32 %v409, 0.0
        %v437 = vmax.f32 %v412, 0.0
        %v438 = vmax.f32 %v415, 0.0
        %v439 = vmax.f32 %v418, 0.0
        %v440 = vmax.f32 %v421, 0.0
        %v441 = vmax.f32 %v424, 0.0
        %v442 = vld [vmem:[#allocation5 + $0x10] sm:$0xff]
        %v443 = vld [vmem:[#allocation5 + $0x28] sm:$0xff]
        %v444 = vld [vmem:[#allocation5 + $0x40] sm:$0xff]
        %v445 = vld [vmem:[#allocation5 + $0x58] sm:$0xff]
        %v446 = vld [vmem:[#allocation5 + $0x70] sm:$0xff]
        %v447 = vld [vmem:[#allocation5 + $0x88] sm:$0xff]
        %v448 = vld [vmem:[#allocation5 + $0xa0] sm:$0xff]
        %v449 = vld [vmem:[#allocation5 + $0xb8] sm:$0xff]
        %v450 = vld [vmem:[#allocation5 + $0xd0] sm:$0xff]
        %v451 = vld [vmem:[#allocation5 + $0xe8] sm:$0xff]
        %v452 = vld [vmem:[#allocation5 + $0x100] sm:$0xff]
        %v453 = vld [vmem:[#allocation5 + $0x118] sm:$0xff]
        %v454 = vld [vmem:[#allocation5 + $0x130] sm:$0xff]
        %v455 = vld [vmem:[#allocation5 + $0x148] sm:$0xff]
        %v456 = vld [vmem:[#allocation5 + $0x160] sm:$0xff]
        %v457 = vld [vmem:[#allocation5 + $0x178] sm:$0xff]
        %v458 = vld [vmem:[#allocation7 + $0x2] sm:$0x1]
        %v460 = vperm.slane %v458, 0
        %462 = vmatpush.msra.mxu0 %v457
        %463 = vmatpush.msra.mxu0 %v456
        %464 = vmatpush.msra.mxu0 %v455
        %465 = vmatpush.msra.mxu0 %v454
        %466 = vmatpush.msra.mxu0 %v453
        %467 = vmatpush.msra.mxu0 %v452
        %468 = vmatpush.msra.mxu0 %v451
        %469 = vmatpush.msra.mxu0 %v450
        %470 = vmatpush.msra.mxu0 %v449
        %471 = vmatpush.msra.mxu0 %v448
        %472 = vmatpush.msra.mxu0 %v447
        %473 = vmatpush.msra.mxu0 %v446
        %474 = vmatpush.msra.mxu0 %v445
        %475 = vmatpush.msra.mxu0 %v444
        %476 = vmatpush.msra.mxu0 %v443
        %477 = vmatpush.msra.mxu0 %v442
        %478 = vmatmul.f32.gmra.mxu0 %v426
        %v479 = vpop.f32.mrf.mxu0
        %v480 = vadd.f32 %v460, %v479
        %481 = vmatmul.f32.gmra.mxu0 %v427
        %v482 = vpop.f32.mrf.mxu0
        %v483 = vadd.f32 %v460, %v482
        %484 = vmatmul.f32.gmra.mxu0 %v428
        %v485 = vpop.f32.mrf.mxu0
        %v486 = vadd.f32 %v460, %v485
        %487 = vmatmul.f32.gmra.mxu0 %v429
        %v488 = vpop.f32.mrf.mxu0
        %v489 = vadd.f32 %v460, %v488
        %490 = vmatmul.f32.gmra.mxu0 %v430
        %v491 = vpop.f32.mrf.mxu0
        %v492 = vadd.f32 %v460, %v491
        %493 = vmatmul.f32.gmra.mxu0 %v431
        %v494 = vpop.f32.mrf.mxu0
        %v495 = vadd.f32 %v460, %v494
        %496 = vmatmul.f32.gmra.mxu0 %v432
        %v497 = vpop.f32.mrf.mxu0
        %v498 = vadd.f32 %v460, %v497
        %499 = vmatmul.f32.gmra.mxu0 %v433
        %v500 = vpop.f32.mrf.mxu0
        %v501 = vadd.f32 %v460, %v500
        %502 = vmatmul.f32.gmra.mxu0 %v434
        %v503 = vpop.f32.mrf.mxu0
        %v504 = vadd.f32 %v460, %v503
        %505 = vmatmul.f32.gmra.mxu0 %v435
        %v506 = vpop.f32.mrf.mxu0
        %v507 = vadd.f32 %v460, %v506
        %508 = vmatmul.f32.gmra.mxu0 %v436
        %v509 = vpop.f32.mrf.mxu0
        %v510 = vadd.f32 %v460, %v509
        %511 = vmatmul.f32.gmra.mxu0 %v437
        %v512 = vpop.f32.mrf.mxu0
        %v513 = vadd.f32 %v460, %v512
        %514 = vmatmul.f32.gmra.mxu0 %v438
        %v515 = vpop.f32.mrf.mxu0
        %v516 = vadd.f32 %v460, %v515
        %517 = vmatmul.f32.gmra.mxu0 %v439
        %v518 = vpop.f32.mrf.mxu0
        %v519 = vadd.f32 %v460, %v518
        %520 = vmatmul.f32.gmra.mxu0 %v440
        %v521 = vpop.f32.mrf.mxu0
        %v522 = vadd.f32 %v460, %v521
        %523 = vmatmul.f32.gmra.mxu0 %v441
        %v524 = vpop.f32.mrf.mxu0
        %v525 = vadd.f32 %v460, %v524
        %526 = vdwg.mxu0
        %527 = vst [vmem:[%s221] sm:$0xff] %v480
        %528 = vst [vmem:[%s221 + $0x8] sm:$0xff] %v483
        %529 = vst [vmem:[%s221 + $0x10] sm:$0xff] %v486
        %530 = vst [vmem:[%s221 + $0x18] sm:$0xff] %v489
        %531 = vst [vmem:[%s221 + $0x20] sm:$0xff] %v492
        %532 = vst [vmem:[%s221 + $0x28] sm:$0xff] %v495
        %533 = vst [vmem:[%s221 + $0x30] sm:$0xff] %v498
        %534 = vst [vmem:[%s221 + $0x38] sm:$0xff] %v501
        %535 = vst [vmem:[%s221 + $0x40] sm:$0xff] %v504
        %536 = vst [vmem:[%s221 + $0x48] sm:$0xff] %v507
        %537 = vst [vmem:[%s221 + $0x50] sm:$0xff] %v510
        %538 = vst [vmem:[%s221 + $0x58] sm:$0xff] %v513
        %539 = vst [vmem:[%s221 + $0x60] sm:$0xff] %v516
        %540 = vst [vmem:[%s221 + $0x68] sm:$0xff] %v519
        %541 = vst [vmem:[%s221 + $0x70] sm:$0xff] %v522
        %542 = vst [vmem:[%s221 + $0x78] sm:$0xff] %v525
        %s543 = sand.u32 %s97, 1
        %s544 = scalar_lea.sflag [#allocation4], %s543
        %s545 = sand.u32 %s97, 1
        %s546 = smul.addr %s545, 128
        %s547 = scalar_lea.vmem [#allocation8], %s546
        // Predicated region
        $region45: #{tpu_custom_call.1} parent=31 // pred_check
          %p548 = pneg %p107
        $region46: #{tpu_custom_call.1} parent=31 // pred_check_branch
          %550 = sbr.rel (%p548) target = $region48
        $region47: #{tpu_custom_call.1} parent=31 // pred_region
          %s551 = smul.u32 16, %s21
          %553 = vsyncadd %s544, 0
          %s554 = smul.addr %s551, 8
          %s555 = scalar_lea.hbm %s3, %s554
          %s556 = sshll.u32 %s547, 4
          %s557 = int_to_ptr.vmem [resolvable:$true] %s556
          %s558 = sshll.u32 %s555, 4
          %s559 = int_to_ptr.hbm [resolvable:$true] %s558
          %564 = dma.vmem_to_hbm [thread:$0]  %s557, 2048, %s559, %s544, 128, 128, 8
        $region48: #{tpu_custom_call.1} parent=31 // pred_fallthru
          _
      $region32: #{tpu_custom_call.1} parent=5 // pred_fallthru
        _
      %p565 = scmp.le.s32.totalorder 2, %s16
      // Predicated region
      $region49: #{tpu_custom_call.1} parent=5 // pred_check
        %p566 = pneg %p565
      $region50: #{tpu_custom_call.1} parent=5 // pred_check_branch
        %568 = sbr.rel (%p566) target = $region52
      $region51: #{tpu_custom_call.1} parent=5 // pred_region
        %s569 = ssub.s32 %s16, 2
        // Predicated region
        $region53: #{tpu_custom_call.1} parent=51 // pred_check
          %p570 = pneg %p113
        $region54: #{tpu_custom_call.1} parent=51 // pred_check_branch
          %572 = sbr.rel (%p570) target = $region56
        $region55: #{tpu_custom_call.1} parent=51 // pred_region
          %s573 = sand.u32 %s98, 1
          %s574 = scalar_lea.sflag [#allocation4], %s573
          %s575 = sand.u32 %s98, 1
          %s576 = smul.addr %s575, 128
          %s577 = scalar_lea.vmem [#allocation8], %s576
          %579 = dma.done %s574, 2048
        $region56: #{tpu_custom_call.1} parent=51 // pred_fallthru
          _
      $region52: #{tpu_custom_call.1} parent=5 // pred_fallthru
        _
    $region6: #{tpu_custom_call.1} parent=1 // loop_footer
      %s20 = sadd.s32 1, %s16
    $region7: #{tpu_custom_call.1} parent=1 // loop_footer_branch
      %15 = sbr.rel target = $region3
    $region8: #{tpu_custom_call.1} parent=1 // loop_exit
      _
    %580 = vsyncpa [#allocation3], 1
    %s581 = scalar_lea.sflag [#allocation3], 1
    %582 = vsyncpa %s581, 1
    %583 = vsyncpa [#allocation6], 1
    %584 = vsyncpa [#allocation4], 1
    %s585 = scalar_lea.sflag [#allocation4], 1
    %586 = vsyncpa %s585, 1

</llo_original>
